<compile_context>
chip_gen: v7x
topology: tpu7x:2x2x1
jax: 0.10.0
libtpu: 0.0.40
codegen_flags: <defaults>
</compile_context>

<pallas_src>
import functools
import math

import jax
import jax.numpy as jnp
from jax import lax
from jax.experimental import pallas as pl
from jax.experimental.pallas import tpu as pltpu


def _compiler_params(semantics, est_block_bytes):
    # Explicit scoped-VMEM budget (the default scoped limit is ~32 MiB):
    # 2x the resident block estimate (double-buffered pipeline) plus slack,
    # clamped under v7x's 64 MiB physical VMEM.  Re-derive tiles if this
    # clamps at production D/S.
    limit = int(min(max(2 * est_block_bytes + (8 << 20), 32 << 20), 60 << 20))
    return pltpu.CompilerParams(dimension_semantics=semantics,
                                vmem_limit_bytes=limit)


# ---------------------------------------------------------------------------
# Kernel A: tiled linear  y[b, s, :] = x[b, s, :] @ W + bias
#   Used for (a) the fused QKV projection with W = (D, 3D) and (b) the output
#   projection with W = (D, D).  Operands are cast to the weight dtype (bf16
#   by default) for the MXU; accumulation is f32.
# ---------------------------------------------------------------------------
def _linear_kernel(x_ref, w_ref, b_ref, o_ref):
    x = x_ref[0].astype(w_ref.dtype)
    acc = jnp.dot(x, w_ref[...], preferred_element_type=jnp.float32)
    o_ref[0] = (acc + b_ref[...]).astype(o_ref.dtype)


def linear(x, w_t, b2d, *, row_tile, out_dtype=None):
    B, S, Din = x.shape
    Dout = w_t.shape[1]
    out_dtype = out_dtype or x.dtype
    assert S % row_tile == 0
    est = (row_tile * Din * jnp.dtype(x.dtype).itemsize
           + Din * Dout * jnp.dtype(w_t.dtype).itemsize
           + Dout * 4
           + row_tile * Dout * jnp.dtype(out_dtype).itemsize)
    return pl.pallas_call(
        _linear_kernel,
        out_shape=jax.ShapeDtypeStruct((B, S, Dout), out_dtype),
        grid=(B, S // row_tile),
        in_specs=[
            pl.BlockSpec((1, row_tile, Din), lambda b, si: (b, si, 0)),
            pl.BlockSpec((Din, Dout), lambda b, si: (0, 0)),
            pl.BlockSpec((1, Dout), lambda b, si: (0, 0)),
        ],
        out_specs=pl.BlockSpec((1, row_tile, Dout), lambda b, si: (b, si, 0)),
        compiler_params=_compiler_params(("parallel", "parallel"), est),
    )(x, w_t, b2d)


# ---------------------------------------------------------------------------
# Kernel B: flash attention, all heads per grid step, lane-dense (B,S,D) out.
#   Q is pre-scaled by 1/sqrt(d_k) (folded into W_q), so no per-step score
#   scaling.  fill = finfo(f32).min matches torch's masked_fill semantics
#   (fully masked rows -> uniform attention).
# ---------------------------------------------------------------------------
def _flash_kernel(seed_ref, q_ref, k_ref, v_ref, mask_ref, o_ref,
                  m_sc, l_sc, acc_sc, *, n_heads, d_k, fill, causal,
                  dropout_p, training):
    ki = pl.program_id(2)
    nk = pl.num_programs(2)
    tq = q_ref.shape[1]
    tk = k_ref.shape[1]
    q0 = pl.program_id(1) * tq
    k0 = ki * tk

    @pl.when(ki == 0)
    def _init():
        m_sc[...] = jnp.full_like(m_sc, -jnp.inf)
        l_sc[...] = jnp.zeros_like(l_sc)
        acc_sc[...] = jnp.zeros_like(acc_sc)

    def update():
        q = q_ref[0]   # (tq, D) compute dtype, already scaled by 1/sqrt(d_k)
        k = k_ref[0]   # (tk, D)
        v = v_ref[0]   # (tk, D)

        if mask_ref is not None:
            valid = mask_ref[0] != 0                      # int8 -> bool
        elif causal:
            rows = q0 + lax.broadcasted_iota(jnp.int32, (tq, tk), 0)
            cols = k0 + lax.broadcasted_iota(jnp.int32, (tq, tk), 1)
            valid = rows >= cols                          # generated in-kernel
        else:
            valid = None                                  # mask=None path

        for h in range(n_heads):
            sl = slice(h * d_k, (h + 1) * d_k)
            s = lax.dot_general(q[:, sl], k[:, sl], (((1,), (1,)), ((), ())),
                                preferred_element_type=jnp.float32)
            if valid is not None:
                s = jnp.where(valid, s, fill)

            m_prev = m_sc[h]
            m_new = jnp.maximum(m_prev, s.max(axis=-1, keepdims=True))
            alpha = jnp.exp(m_prev - m_new)
            # NOTE: on v6e/v7x this exp/where chain could run in bf16; kept
            # f32 so v5e (no bf16 VPU/EUP) takes the same path.
            p = jnp.exp(s - m_new)
            # Normalizer uses un-dropped probabilities (torch applies dropout
            # after softmax), so update l before dropping p.
            l_sc[h] = alpha * l_sc[h] + p.sum(axis=-1, keepdims=True)

            if training and dropout_p > 0.0:
                # TODO(synk): cannot bit-match torch's dropout RNG stream.
                blk = ((pl.program_id(0) * pl.num_programs(1)
                        + pl.program_id(1)) * nk + ki) * n_heads + h
                pltpu.prng_seed(seed_ref[0] + blk)
                bits = pltpu.bitcast(pltpu.prng_random_bits(p.shape),
                                     jnp.uint32)
                thresh = jnp.uint32(min(int(dropout_p * 4294967296.0),
                                        4294967295))
                p = jnp.where(bits >= thresh, p * (1.0 / (1.0 - dropout_p)),
                              0.0)

            acc_sc[h] = alpha * acc_sc[h] + jnp.dot(
                p.astype(v.dtype), v[:, sl],
                preferred_element_type=jnp.float32)
            m_sc[h] = m_new

    if causal:
        # Skip kv tiles lying entirely above the diagonal (fully masked):
        # ~2x less QK^T/exp work for causal masks.
        pl.when(k0 <= q0 + tq - 1)(update)
    else:
        update()

    @pl.when(ki == nk - 1)
    def _finalize():
        outs = [acc_sc[h] * pl.reciprocal(l_sc[h], approx=True)
                for h in range(n_heads)]
        o_ref[0] = jnp.concatenate(outs, axis=-1).astype(o_ref.dtype)


def flash_attention(q_arr, k_arr, v_arr, *, n_heads, d_k, cols, mask=None,
                    causal=False, dropout_p=0.0, training=False, seed=0,
                    q_tile, kv_tile, out_dtype):
    B, Sq = q_arr.shape[0], q_arr.shape[1]
    Sk = k_arr.shape[1]
    D = n_heads * d_k
    assert Sq % q_tile == 0 and Sk % kv_tile == 0
    qc, kc, vc = cols            # block indices along the last (column) dim
    fill = float(jnp.finfo(jnp.float32).min)

    kern = functools.partial(_flash_kernel, n_heads=n_heads, d_k=d_k,
                             fill=fill, causal=causal, dropout_p=dropout_p,
                             training=training)

    in_specs = [
        pl.BlockSpec((1, q_tile, D), lambda b, qi, ki, s: (b, qi, qc)),
        pl.BlockSpec((1, kv_tile, D), lambda b, qi, ki, s: (b, ki, kc)),
        pl.BlockSpec((1, kv_tile, D), lambda b, qi, ki, s: (b, ki, vc)),
    ]
    args = [q_arr, k_arr, v_arr]
    itemsize = jnp.dtype(q_arr.dtype).itemsize
    est = ((q_tile + 2 * kv_tile) * D * itemsize
           + q_tile * D * jnp.dtype(out_dtype).itemsize
           + n_heads * q_tile * (d_k + 2) * 4)

    use_mask = (mask is not None) and (not causal)
    if use_mask:
        mask_i8 = mask if mask.dtype == jnp.int8 else mask.astype(jnp.int8)
        in_specs.append(pl.BlockSpec((1, q_tile, kv_tile),
                                     lambda b, qi, ki, s: (b, qi, ki)))
        args.append(mask_i8)
        est += q_tile * kv_tile
        body = kern
    else:
        def body(seed_ref, q, k, v, o, m_sc, l_sc, acc_sc):
            return kern(seed_ref, q, k, v, None, o, m_sc, l_sc, acc_sc)

    seed_arr = jnp.array([seed], dtype=jnp.int32)
    return pl.pallas_call(
        body,
        out_shape=jax.ShapeDtypeStruct((B, Sq, D), out_dtype),
        grid_spec=pltpu.PrefetchScalarGridSpec(
            num_scalar_prefetch=1,
            grid=(B, Sq // q_tile, Sk // kv_tile),
            in_specs=in_specs,
            out_specs=pl.BlockSpec((1, q_tile, D),
                                   lambda b, qi, ki, s: (b, qi, 0)),
            scratch_shapes=[
                pltpu.VMEM((n_heads, q_tile, 1), jnp.float32),   # m
                pltpu.VMEM((n_heads, q_tile, 1), jnp.float32),   # l
                pltpu.VMEM((n_heads, q_tile, d_k), jnp.float32), # acc
            ],
        ),
        compiler_params=_compiler_params(
            ("parallel", "parallel", "arbitrary"), est),
    )(seed_arr, *args)


# ---------------------------------------------------------------------------
# Parameter packing (done ONCE, outside the per-forward path):
#   - PyTorch (out,in) weights transposed to (in,out),
#   - Q/K/V weights+biases concatenated into (D, 3D) / (1, 3D),
#   - 1/sqrt(d_k) folded into the Q columns,
#   - weights cast to the MXU compute dtype (bf16 by default), biases f32.
# ---------------------------------------------------------------------------
def prepare_params(params, n_heads, compute_dtype=jnp.bfloat16):
    D = params["wq"].shape[0]
    d_k = D // n_heads
    scale = 1.0 / math.sqrt(d_k)
    w_qkv = jnp.concatenate(
        [params["wq"].T * scale, params["wk"].T, params["wv"].T],
        axis=1).astype(compute_dtype)
    b_qkv = jnp.concatenate(
        [params["bq"] * scale, params["bk"], params["bv"]]
    )[None, :].astype(jnp.float32)
    return {
        "w_qkv": w_qkv,                                   # (D, 3D)
        "b_qkv": b_qkv,                                   # (1, 3D)
        "w_o": params["wo"].T.astype(compute_dtype),      # (D, D)
        "b_o": params["bo"][None, :].astype(jnp.float32), # (1, D)
    }


# ---------------------------------------------------------------------------
# MultiHeadedAttention.forward
# ---------------------------------------------------------------------------
def multi_headed_attention(query, key, value, packed, *, n_heads, mask=None,
                           causal=False, dropout_p=0.1, training=False,
                           seed=0, row_tile=None, q_tile=None, kv_tile=None,
                           layer_past=None):
    # TODO(synk): layer_past KV-cache concat / `present` output not implemented.
    assert layer_past is None
    B, Sq, D = query.shape
    assert D % n_heads == 0
    d_k = D // n_heads
    Skv = key.shape[1]
    assert value.shape == key.shape

    compute_dtype = packed["w_qkv"].dtype
    ts = row_tile or min(Sq, 256)
    tq = q_tile or min(Sq, 256)
    tk = kv_tile or min(Skv, 256)   # tq*tk <= 256*256: no vreg spills on v7x

    if (query is key) and (key is value):
        # Self-attention fast path: one (row,D)x(D,3D) matmul, x read once,
        # Q/K/V kept lane-dense as column blocks of a single (B,S,3D) array.
        qkv = linear(query, packed["w_qkv"], packed["b_qkv"],
                     row_tile=ts, out_dtype=compute_dtype)
        q_arr = k_arr = v_arr = qkv
        cols = (0, 1, 2)
    else:
        # TODO(synk): cross-attention fallback re-slices the packed weight per
        # call; cache per-input slices if this path is hot.
        ts_kv = min(Skv, ts)
        w, b = packed["w_qkv"], packed["b_qkv"]
        q_arr = linear(query, w[:, :D], b[:, :D],
                       row_tile=ts, out_dtype=compute_dtype)
        k_arr = linear(key, w[:, D:2 * D], b[:, D:2 * D],
                       row_tile=ts_kv, out_dtype=compute_dtype)
        v_arr = linear(value, w[:, 2 * D:], b[:, 2 * D:],
                       row_tile=ts_kv, out_dtype=compute_dtype)
        cols = (0, 0, 0)

    att = flash_attention(q_arr, k_arr, v_arr, n_heads=n_heads, d_k=d_k,
                          cols=cols, mask=None if causal else mask,
                          causal=causal, dropout_p=dropout_p,
                          training=training, seed=seed,
                          q_tile=tq, kv_tile=tk, out_dtype=compute_dtype)

    # Output projection: full-depth (row,D)x(D,D) matmul (head concat is free
    # because att is already laid out as (B, S, H*d_k)).
    return linear(att, packed["w_o"], packed["b_o"], row_tile=ts,
                  out_dtype=query.dtype)


# ---------------------------------------------------------------------------
# Init (PyTorch Linear shapes: weight (out, in), bias (out,)) + reference.
# ---------------------------------------------------------------------------
def init_params(key, d_model):
    ks = jax.random.split(key, 8)
    s = 1.0 / math.sqrt(d_model)
    return {
        "wq": jax.random.normal(ks[0], (d_model, d_model), jnp.float32) * s,
        "wk": jax.random.normal(ks[1], (d_model, d_model), jnp.float32) * s,
        "wv": jax.random.normal(ks[2], (d_model, d_model), jnp.float32) * s,
        "wo": jax.random.normal(ks[3], (d_model, d_model), jnp.float32) * s,
        "bq": jax.random.normal(ks[4], (d_model,), jnp.float32) * 0.01,
        "bk": jax.random.normal(ks[5], (d_model,), jnp.float32) * 0.01,
        "bv": jax.random.normal(ks[6], (d_model,), jnp.float32) * 0.01,
        "bo": jax.random.normal(ks[7], (d_model,), jnp.float32) * 0.01,
    }


def reference_mha(query, key, value, params, mask, n_heads):
    """Pure-JAX mirror of the torch module (eval mode), full f32 precision."""
    with jax.default_matmul_precision("highest"):
        B, Sq, D = query.shape
        d_k = D // n_heads

        def lin(x, w, b):
            return jnp.einsum("bsi,oi->bso", x, w) + b

        q = lin(query, params["wq"], params["bq"]).reshape(B, Sq, n_heads, d_k)
        k = lin(key, params["wk"], params["bk"]).reshape(B, -1, n_heads, d_k)
        v = lin(value, params["wv"], params["bv"]).reshape(B, -1, n_heads, d_k)
        q, k, v = (t.transpose(0, 2, 1, 3) for t in (q, k, v))

        scores = jnp.einsum("bhqd,bhkd->bhqk", q, k) / math.sqrt(d_k)
        if mask is not None:
            scores = jnp.where(mask[:, None, :, :], scores,
                               jnp.finfo(scores.dtype).min)
        p = jax.nn.softmax(scores, axis=-1)
        x = jnp.einsum("bhqk,bhkd->bhqd", p, v)
        x = x.transpose(0, 2, 1, 3).reshape(B, Sq, D)
        return lin(x, params["wo"], params["bo"])


if __name__ == "__main__":
    B, S, D, H = 2, 16, 128, 4          # d_k = 32

    root = jax.random.PRNGKey(0)
    kx, kp = jax.random.split(root)
    x = jax.random.normal(kx, (B, S, D), jnp.float32)
    mask = jnp.broadcast_to(jnp.tril(jnp.ones((S, S), jnp.bool_)), (B, S, S))
    params = init_params(kp, D)
    ref = reference_mha(x, x, x, params, mask, H)

    # 1) f32 compute path with an explicit (int8-packed) mask: tight check.
    packed_f32 = prepare_params(params, H, compute_dtype=jnp.float32)
    out_f32 = multi_headed_attention(x, x, x, packed_f32, n_heads=H,
                                     mask=mask, dropout_p=0.1, training=False)
    out_f32 = jax.block_until_ready(out_f32)
    assert out_f32.shape == (B, S, D)
    err32 = float(jnp.max(jnp.abs(out_f32 - ref)))
    # Tolerance covers pl.reciprocal(approx=True) (~2^-12) and online-softmax
    # reassociation.
    assert jnp.allclose(out_f32, ref, rtol=5e-3, atol=5e-3), err32

    # 2) default bf16-MXU path with the in-kernel causal mask (zero mask HBM
    #    traffic): loose sanity check, bounded by bf16 operand rounding.
    packed_bf16 = prepare_params(params, H)   # bf16 compute dtype
    out_bf16 = multi_headed_attention(x, x, x, packed_bf16, n_heads=H,
                                      causal=True, dropout_p=0.1,
                                      training=False)
    out_bf16 = jax.block_until_ready(out_bf16).astype(jnp.float32)
    max_err = float(jnp.max(jnp.abs(out_bf16 - ref)))
    rel_fro = float(jnp.linalg.norm(out_bf16 - ref) / jnp.linalg.norm(ref))
    assert max_err < 0.35 and rel_fro < 0.15, (max_err, rel_fro)

    print("KERNEL_OK")
</pallas_src>

<mosaic_0001>
module attributes {stable_mosaic.version = 11 : i64} {
  func.func @_linear_kernel(%arg0: i32, %arg1: i32, %arg2: memref<1x16x128xf32, #tpu.memory_space<vmem>>, %arg3: memref<128x384xf32, #tpu.memory_space<vmem>>, %arg4: memref<1x384xf32, #tpu.memory_space<vmem>>, %arg5: memref<1x16x384xf32, #tpu.memory_space<vmem>>) attributes {dimension_semantics = [#tpu.dimension_semantics<parallel>, #tpu.dimension_semantics<parallel>], iteration_bounds = array<i64: 2, 1>, scalar_prefetch = 0 : i64, scratch_operands = 0 : i64, tpu.core_type = #tpu.core_type<tc>, window_params = [{transform_indices = @transform_0, window_bounds = array<i64: 1, 16, 128>}, {pipeline_mode = #tpu.pipeline_mode<synchronous>, transform_indices = @transform_1, window_bounds = array<i64: 128, 384>}, {pipeline_mode = #tpu.pipeline_mode<synchronous>, transform_indices = @transform_2, window_bounds = array<i64: 1, 384>}, {transform_indices = @transform_3, window_bounds = array<i64: 1, 16, 384>}]} {
    %c0 = arith.constant 0 : index
    %c0_0 = arith.constant 0 : index
    %c0_1 = arith.constant 0 : index
    %0 = vector.load %arg2[%c0, %c0_0, %c0_1] : memref<1x16x128xf32, #tpu.memory_space<vmem>>, vector<1x16x128xf32>
    %1 = vector.shape_cast %0 : vector<1x16x128xf32> to vector<16x128xf32>
    %c0_2 = arith.constant 0 : index
    %c0_3 = arith.constant 0 : index
    %2 = vector.load %arg3[%c0_2, %c0_3] : memref<128x384xf32, #tpu.memory_space<vmem>>, vector<128x384xf32>
    %cst = arith.constant dense<0.000000e+00> : vector<16x384xf32>
    %3 = tpu.matmul %1, %2, %cst {dimension_numbers = #tpu.dot_dimension_numbers<[1], [0], [0], [1], [0, 0, 1, 1], [], []>} : vector<16x128xf32>, vector<128x384xf32>, vector<16x384xf32> -> vector<16x384xf32>
    %c0_4 = arith.constant 0 : index
    %c0_5 = arith.constant 0 : index
    %4 = vector.load %arg4[%c0_4, %c0_5] : memref<1x384xf32, #tpu.memory_space<vmem>>, vector<1x384xf32>
    %5 = vector.broadcast %4 : vector<1x384xf32> to vector<16x384xf32>
    %6 = arith.addf %3, %5 : vector<16x384xf32>
    %c0_6 = arith.constant 0 : index
    %c0_7 = arith.constant 0 : index
    %c0_8 = arith.constant 0 : index
    %7 = vector.load %arg5[%c0_6, %c0_7, %c0_8] : memref<1x16x384xf32, #tpu.memory_space<vmem>>, vector<1x16x384xf32>
    %8 = vector.shape_cast %7 : vector<1x16x384xf32> to vector<16x384xf32>
    %9 = vector.shape_cast %6 : vector<16x384xf32> to vector<1x16x384xf32>
    tpu.vector_store %arg5[%c0_6, %c0_7, %c0_8], %9 {strides = array<i32>} : memref<1x16x384xf32, #tpu.memory_space<vmem>>, vector<1x16x384xf32>,
    return
  }
  func.func @transform_0(%arg0: i32, %arg1: i32) -> (i32, i32, i32) {
    %c0_i32 = arith.constant 0 : i32
    %c0_i32_0 = arith.constant 0 : i32
    return %arg0, %arg1, %c0_i32 : i32, i32, i32
  }
  func.func @transform_1(%arg0: i32, %arg1: i32) -> (i32, i32) {
    %c0_i32 = arith.constant 0 : i32
    %c0_i32_0 = arith.constant 0 : i32
    %c0_i32_1 = arith.constant 0 : i32
    return %c0_i32, %c0_i32_0 : i32, i32
  }
  func.func @transform_2(%arg0: i32, %arg1: i32) -> (i32, i32) {
    %c0_i32 = arith.constant 0 : i32
    %c0_i32_0 = arith.constant 0 : i32
    %c0_i32_1 = arith.constant 0 : i32
    return %c0_i32, %c0_i32_0 : i32, i32
  }
  func.func @transform_3(%arg0: i32, %arg1: i32) -> (i32, i32, i32) {
    %c0_i32 = arith.constant 0 : i32
    %c0_i32_0 = arith.constant 0 : i32
    return %arg0, %arg1, %c0_i32 : i32, i32, i32
  }
}

</mosaic_0001>

<llo_original>
// kernel: tpu_custom_call.1
$region0: #{tpu_custom_call.1}
  #allocation0 [shape = 'u32[]', space=smem, size = 0x4, offset = 0x4, fixed_abs, tag = 'smem constant byte address 0x4 - core index']
  #allocation1 [shape = 'u32[144,128]{1,0:T(1,128)}', space=vmem, size = 0x12000, scoped, tag = 'internal scratch']
  %s0 = inlined_call_operand.hbm [shape: f32[2,16,128], index: 0, kind: input, shape index: {}]
  %s1 = inlined_call_operand.hbm [shape: f32[128,384], index: 1, kind: input, shape index: {}]
  %s2 = inlined_call_operand.vmem [shape: f32[1,384], index: 2, kind: input, shape index: {}]
  %s3 = inlined_call_operand.hbm [shape: f32[2,16,384], index: 3, kind: output, shape index: {}]
  %s4 = sld [smem:[#allocation0]]
  $region53: #{tpu_custom_call.1} parent=0
    _
  %s6 = ssub.s32 1, %s4
  %s7 = scalar_select 0, %s6, %s4
  $region1: #{tpu_custom_call.1} parent=0
    #allocation2 [shape = 'u8[16384]{0}', space=vmem, size = 0x4000, scoped, tag = 'input window, operand 0']
    #allocation3 [shape = 's32[2]{0}', space=sflag, size = 0x8, scoped, tag = 'scoped memory for tpu_custom_call.1']
    #allocation4 [shape = 's32[2]{0}', space=sflag, size = 0x8, scoped, tag = 'scoped memory for tpu_custom_call.1']
    #allocation5 [shape = 'u8[196608]{0}', space=vmem, size = 0x30000, scoped, tag = 'input window, operand 1, single buffered']
    #allocation6 [shape = 's32[1]{0}', space=sflag, size = 0x4, scoped, tag = 'scoped memory for tpu_custom_call.1']
    #allocation7 [shape = 'u8[49152]{0}', space=vmem, size = 0xc000, scoped, tag = 'output window, operand 0']
    %8 = vsyncpa [#allocation3], 0
    %s9 = scalar_lea.sflag [#allocation3], 1
    %10 = vsyncpa %s9, 0
    %11 = vsyncpa [#allocation6], 0
    %12 = vsyncpa [#allocation4], 0
    %s13 = scalar_lea.sflag [#allocation4], 1
    %14 = vsyncpa %s13, 0
    loop: start=0, step=1, limit=4
    $region2: #{tpu_custom_call.1} parent=1 // loop_pre_header
      _
    $region3: #{tpu_custom_call.1} parent=1 // loop_header
      %s16 = sphi 0, %s20
      %p17 = scmp.ge.s32.totalorder %s16, 4
      %s23 = sphi 0, %s35
      %s24 = sphi 0, %s31
      %s25 = sphi 0, %s23
      %s26 = sphi 0, %s24
      %s27 = sphi 0, %s25
      %s28 = sphi 0, %s26
      %s40 = sphi 0, %s42
      %s43 = sphi 0, %s40
      %s44 = sphi 0, %s43
      %s60 = sphi 0, %s44
      %s64 = sphi 0, %s64
      %s66 = sphi 0, %s64
      %s67 = sphi 0, %s66
      %s81 = sphi 0, %s67
      %s85 = sphi 0, %s85
      %s87 = sphi 0, %s85
      %s88 = sphi 0, %s87
      %s102 = sphi 0, %s88
      %s110 = sphi 0, %s112
      %s113 = sphi 0, %s110
      %s114 = sphi 0, %s113
      %s130 = sphi 0, %s114
    $region4: #{tpu_custom_call.1} parent=1 // loop_header_branch
      %19 = sbr.rel (%p17) target = $region8
    $region5: #{tpu_custom_call.1} parent=1 // loop_body
      %s21 = ssub.s32 %s16, 1
      %s22 = ssub.s32 %s16, 2
      %s29 = sadd.s32 1, %s24
      %p30 = scmp.ge.s32.totalorder %s29, 1
      %s31 = scalar_select %p30, 0, %s29
      %s32 = sadd.s32 1, %s23
      %s33 = scalar_select %p30, %s32, %s23
      %p34 = scmp.ge.s32.totalorder %s33, 2
      %s35 = scalar_select %p34, 0, %s33
      %s36 = ssub.s32 %s23, %s35
      %s37 = ssub.s32 %s24, %s31
      %s38 = sor.u32 %s36, %s37
      %p39 = scmp.eq.s32.totalorder %s38, 0
      %s41 = sadd.s32 %s40, 1
      %s42 = scalar_select %p39, %s40, %s41
      %p45 = pneg %p39
      %p46 = scmp.eq.s32.totalorder %s16, 1
      %p47 = por %p45, %p46
      %p48 = scmp.ne.s32.totalorder %s40, %s43
      %p49 = scmp.eq.s32.totalorder %s16, 0
      %p50 = por %p48, %p49
      %p51 = scmp.ne.s32.totalorder %s40, %s43
      %p52 = scmp.eq.s32.totalorder %s21, 1
      %p53 = por %p51, %p52
      %p54 = scmp.ne.s32.totalorder %s43, %s44
      %p55 = scmp.eq.s32.totalorder %s21, 0
      %p56 = por %p54, %p55
      %p57 = scmp.ne.s32.totalorder %s43, %s44
      %p58 = scmp.eq.s32.totalorder %s22, 1
      %p59 = por %p57, %p58
      %p61 = scmp.ne.s32.totalorder %s44, %s60
      %p62 = scmp.eq.s32.totalorder %s22, 0
      %p63 = por %p61, %p62
      %s65 = sadd.s32 %s64, 1
      %p68 = scmp.eq.s32.totalorder %s16, 1
      %p69 = scmp.ne.s32.totalorder %s64, %s66
      %p70 = scmp.eq.s32.totalorder %s16, 0
      %p71 = por %p69, %p70
      %p72 = scmp.ne.s32.totalorder %s64, %s66
      %p73 = scmp.eq.s32.totalorder %s21, 1
      %p74 = por %p72, %p73
      %p75 = scmp.ne.s32.totalorder %s66, %s67
      %p76 = scmp.eq.s32.totalorder %s21, 0
      %p77 = por %p75, %p76
      %p78 = scmp.ne.s32.totalorder %s66, %s67
      %p79 = scmp.eq.s32.totalorder %s22, 1
      %p80 = por %p78, %p79
      %p82 = scmp.ne.s32.totalorder %s67, %s81
      %p83 = scmp.eq.s32.totalorder %s22, 0
      %p84 = por %p82, %p83
      %s86 = sadd.s32 %s85, 1
      %p89 = scmp.eq.s32.totalorder %s16, 1
      %p90 = scmp.ne.s32.totalorder %s85, %s87
      %p91 = scmp.eq.s32.totalorder %s16, 0
      %p92 = por %p90, %p91
      %p93 = scmp.ne.s32.totalorder %s85, %s87
      %p94 = scmp.eq.s32.totalorder %s21, 1
      %p95 = por %p93, %p94
      %p96 = scmp.ne.s32.totalorder %s87, %s88
      %p97 = scmp.eq.s32.totalorder %s21, 0
      %p98 = por %p96, %p97
      %p99 = scmp.ne.s32.totalorder %s87, %s88
      %p100 = scmp.eq.s32.totalorder %s22, 1
      %p101 = por %p99, %p100
      %p103 = scmp.ne.s32.totalorder %s88, %s102
      %p104 = scmp.eq.s32.totalorder %s22, 0
      %p105 = por %p103, %p104
      %s106 = ssub.s32 %s23, %s35
      %s107 = ssub.s32 %s24, %s31
      %s108 = sor.u32 %s106, %s107
      %p109 = scmp.eq.s32.totalorder %s108, 0
      %s111 = sadd.s32 %s110, 1
      %s112 = scalar_select %p109, %s110, %s111
      %p115 = pneg %p109
      %p116 = scmp.eq.s32.totalorder %s16, 1
      %p117 = por %p115, %p116
      %p118 = scmp.ne.s32.totalorder %s110, %s113
      %p119 = scmp.eq.s32.totalorder %s16, 0
      %p120 = por %p118, %p119
      %p121 = scmp.ne.s32.totalorder %s110, %s113
      %p122 = scmp.eq.s32.totalorder %s21, 1
      %p123 = por %p121, %p122
      %p124 = scmp.ne.s32.totalorder %s113, %s114
      %p125 = scmp.eq.s32.totalorder %s21, 0
      %p126 = por %p124, %p125
      %p127 = scmp.ne.s32.totalorder %s113, %s114
      %p128 = scmp.eq.s32.totalorder %s22, 1
      %p129 = por %p127, %p128
      %p131 = scmp.ne.s32.totalorder %s114, %s130
      %p132 = scmp.eq.s32.totalorder %s22, 0
      %p133 = por %p131, %p132
      %p134 = scmp.le.s32.totalorder 1, %s16
      %p135 = scmp.lt.s32.totalorder %s16, 3
      %p136 = pnand %p134, %p135
      %p137 = pneg %p136
      // Predicated region
      $region9: #{tpu_custom_call.1} parent=5 // pred_check
        _
      $region10: #{tpu_custom_call.1} parent=5 // pred_check_branch
        %139 = sbr.rel (%p136) target = $region12
      $region11: #{tpu_custom_call.1} parent=5 // pred_region
        %s140 = ssub.s32 %s16, 1
        // Predicated region
        $region13: #{tpu_custom_call.1} parent=11 // pred_check
          %p141 = pneg %p77
        $region14: #{tpu_custom_call.1} parent=11 // pred_check_branch
          %143 = sbr.rel (%p141) target = $region16
        $region15: #{tpu_custom_call.1} parent=11 // pred_region
          %s145 = ssub.s32 6144, 6144
          %146 = vsyncadd [#allocation6], %s145
          %s147 = sshll.u32 [#allocation5], 4
          %s148 = int_to_ptr.vmem [resolvable:$true] %s147
          %153 = dma.hbm_to_vmem [thread:$0]  %s1, 6144, %s148, [#allocation6], 384, 384, 24
        $region16: #{tpu_custom_call.1} parent=11 // pred_fallthru
          _
        // Predicated region
        $region17: #{tpu_custom_call.1} parent=11 // pred_check
          %p154 = pneg %p98
        $region18: #{tpu_custom_call.1} parent=11 // pred_check_branch
          %156 = sbr.rel (%p154) target = $region20
        $region19: #{tpu_custom_call.1} parent=11 // pred_region
          _
        $region20: #{tpu_custom_call.1} parent=11 // pred_fallthru
          _
      $region12: #{tpu_custom_call.1} parent=5 // pred_fallthru
        _
      %p157 = scmp.lt.s32.totalorder %s16, 2
      // Predicated region
      $region21: #{tpu_custom_call.1} parent=5 // pred_check
        %p158 = pneg %p157
      $region22: #{tpu_custom_call.1} parent=5 // pred_check_branch
        %160 = sbr.rel (%p158) target = $region24
      $region23: #{tpu_custom_call.1} parent=5 // pred_region
        // Predicated region
        $region25: #{tpu_custom_call.1} parent=23 // pred_check
          %p161 = pneg %p50
        $region26: #{tpu_custom_call.1} parent=23 // pred_check_branch
          %163 = sbr.rel (%p161) target = $region28
        $region27: #{tpu_custom_call.1} parent=23 // pred_region
          %s164 = sand.u32 %s40, 1
          %s165 = scalar_lea.sflag [#allocation3], %s164
          %s166 = sand.u32 %s40, 1
          %s167 = smul.addr %s166, 16
          %s168 = scalar_lea.vmem [#allocation2], %s167
          %s169 = smul.u32 2, %s24
          %s171 = ssub.s32 256, 256
          %172 = vsyncadd %s165, %s171
          %s173 = smul.addr %s23, 2
          %s174 = sadd.s32 %s169, %s173
          %s175 = smul.addr %s174, 128
          %s176 = scalar_lea.hbm %s0, %s175
          %s177 = sshll.u32 %s168, 4
          %s178 = int_to_ptr.vmem [resolvable:$true] %s177
          %183 = dma.hbm_to_vmem [thread:$0]  %s176, 256, %s178, %s165, 128, 128, 8
        $region28: #{tpu_custom_call.1} parent=23 // pred_fallthru
          _
      $region24: #{tpu_custom_call.1} parent=5 // pred_fallthru
        _
      %p184 = scmp.le.s32.totalorder 1, %s16
      %p185 = scmp.lt.s32.totalorder %s16, 3
      %p186 = pnand %p184, %p185
      %p187 = pneg %p186
      // Predicated region
      $region29: #{tpu_custom_call.1} parent=5 // pred_check
        _
      $region30: #{tpu_custom_call.1} parent=5 // pred_check_branch
        %189 = sbr.rel (%p186) target = $region32
      $region31: #{tpu_custom_call.1} parent=5 // pred_region
        %s190 = ssub.s32 %s16, 1
        %s191 = sand.u32 %s43, 1
        %s192 = scalar_lea.sflag [#allocation3], %s191
        %s193 = sand.u32 %s43, 1
        %s194 = smul.addr %s193, 16
        %s195 = scalar_lea.vmem [#allocation2], %s194
        // Predicated region
        $region33: #{tpu_custom_call.1} parent=31 // pred_check
          %p196 = pneg %p56
        $region34: #{tpu_custom_call.1} parent=31 // pred_check_branch
          %198 = sbr.rel (%p196) target = $region36
        $region35: #{tpu_custom_call.1} parent=31 // pred_region
          %199 = dma.done %s192, 256
        $region36: #{tpu_custom_call.1} parent=31 // pred_fallthru
          _
        // Predicated region
        $region37: #{tpu_custom_call.1} parent=31 // pred_check
          %p200 = pneg %p77
        $region38: #{tpu_custom_call.1} parent=31 // pred_check_branch
          %202 = sbr.rel (%p200) target = $region40
        $region39: #{tpu_custom_call.1} parent=31 // pred_region
          %203 = dma.done [#allocation6], 6144
        $region40: #{tpu_custom_call.1} parent=31 // pred_fallthru
          _
        %s204 = sand.u32 %s43, 1
        %s205 = scalar_lea.sflag [#allocation3], %s204
        %s206 = sand.u32 %s43, 1
        %s207 = smul.addr %s206, 16
        %s208 = scalar_lea.vmem [#allocation2], %s207
        %p209 = pneg %p56
        %p210 = pneg %p53
        %p211 = pneg %p77
        %p212 = pneg %p74
        %p213 = pneg %p98
        %p214 = pneg %p95
        %p215 = pneg %p126
        %p216 = pneg %p123
        %s217 = sand.u32 %s113, 1
        %s218 = scalar_lea.sflag [#allocation4], %s217
        %s219 = sand.u32 %s113, 1
        %s220 = smul.addr %s219, 48
        %s221 = scalar_lea.vmem [#allocation7], %s220
        %s222 = smul.u32 2, %s26
        %s223 = smul.u32 2, %s26
        %v224 = vld [vmem:[%s195] sm:$0xff]
        %v225 = vld [vmem:[%s195 + $0x8] sm:$0xff]
        %v226 = vld [vmem:[#allocation5] sm:$0xff]
        %v227 = vld [vmem:[#allocation5 + $0x8] sm:$0xff]
        %v228 = vld [vmem:[#allocation5 + $0x10] sm:$0xff]
        %v229 = vld [vmem:[#allocation5 + $0x18] sm:$0xff]
        %v230 = vld [vmem:[#allocation5 + $0x20] sm:$0xff]
        %v231 = vld [vmem:[#allocation5 + $0x28] sm:$0xff]
        %v232 = vld [vmem:[#allocation5 + $0x30] sm:$0xff]
        %v233 = vld [vmem:[#allocation5 + $0x38] sm:$0xff]
        %v234 = vld [vmem:[#allocation5 + $0x40] sm:$0xff]
        %v235 = vld [vmem:[#allocation5 + $0x48] sm:$0xff]
        %v236 = vld [vmem:[#allocation5 + $0x50] sm:$0xff]
        %v237 = vld [vmem:[#allocation5 + $0x58] sm:$0xff]
        %v238 = vld [vmem:[#allocation5 + $0x60] sm:$0xff]
        %v239 = vld [vmem:[#allocation5 + $0x68] sm:$0xff]
        %v240 = vld [vmem:[#allocation5 + $0x70] sm:$0xff]
        %v241 = vld [vmem:[#allocation5 + $0x78] sm:$0xff]
        %v242 = vld [vmem:[#allocation5 + $0x80] sm:$0xff]
        %v243 = vld [vmem:[#allocation5 + $0x88] sm:$0xff]
        %v244 = vld [vmem:[#allocation5 + $0x90] sm:$0xff]
        %v245 = vld [vmem:[#allocation5 + $0x98] sm:$0xff]
        %v246 = vld [vmem:[#allocation5 + $0xa0] sm:$0xff]
        %v247 = vld [vmem:[#allocation5 + $0xa8] sm:$0xff]
        %v248 = vld [vmem:[#allocation5 + $0xb0] sm:$0xff]
        %v249 = vld [vmem:[#allocation5 + $0xb8] sm:$0xff]
        %v250 = vld [vmem:[#allocation5 + $0xc0] sm:$0xff]
        %v251 = vld [vmem:[#allocation5 + $0xc8] sm:$0xff]
        %v252 = vld [vmem:[#allocation5 + $0xd0] sm:$0xff]
        %v253 = vld [vmem:[#allocation5 + $0xd8] sm:$0xff]
        %v254 = vld [vmem:[#allocation5 + $0xe0] sm:$0xff]
        %v255 = vld [vmem:[#allocation5 + $0xe8] sm:$0xff]
        %v256 = vld [vmem:[#allocation5 + $0xf0] sm:$0xff]
        %v257 = vld [vmem:[#allocation5 + $0xf8] sm:$0xff]
        %v258 = vld [vmem:[#allocation5 + $0x100] sm:$0xff]
        %v259 = vld [vmem:[#allocation5 + $0x108] sm:$0xff]
        %v260 = vld [vmem:[#allocation5 + $0x110] sm:$0xff]
        %v261 = vld [vmem:[#allocation5 + $0x118] sm:$0xff]
        %v262 = vld [vmem:[#allocation5 + $0x120] sm:$0xff]
        %v263 = vld [vmem:[#allocation5 + $0x128] sm:$0xff]
        %v264 = vld [vmem:[#allocation5 + $0x130] sm:$0xff]
        %v265 = vld [vmem:[#allocation5 + $0x138] sm:$0xff]
        %v266 = vld [vmem:[#allocation5 + $0x140] sm:$0xff]
        %v267 = vld [vmem:[#allocation5 + $0x148] sm:$0xff]
        %v268 = vld [vmem:[#allocation5 + $0x150] sm:$0xff]
        %v269 = vld [vmem:[#allocation5 + $0x158] sm:$0xff]
        %v270 = vld [vmem:[#allocation5 + $0x160] sm:$0xff]
        %v271 = vld [vmem:[#allocation5 + $0x168] sm:$0xff]
        %v272 = vld [vmem:[#allocation5 + $0x170] sm:$0xff]
        %v273 = vld [vmem:[#allocation5 + $0x178] sm:$0xff]
        %v274 = vld [vmem:[%s2] sm:$0x7]
        %v276 = vlaneseq
        %v277 = vshrl.u32 %v276, 7
        %v278 = vsub.s32 0, %v277
        %v279 = vrot.slane %v274, %v278
        %v280 = vlaneseq
        %v281 = vshrl.u32 %v280, 7
        %v282 = vsub.s32 1, %v281
        %v283 = vrot.slane %v274, %v282
        %v284 = vlaneseq
        %v285 = vshrl.u32 %v284, 7
        %v286 = vsub.s32 2, %v285
        %v287 = vrot.slane %v274, %v286
        %291 = vmatprep.subr.mxu0 %v227
        %292 = vmatpush1.msra.mxu0 %v226
        %293 = vmatprep.subr.mxu0 %v230
        %294 = vmatpush1.msra.mxu0 %v229
        %295 = vmatprep.subr.mxu0 %v233
        %296 = vmatpush1.msra.mxu0 %v232
        %297 = vmatprep.subr.mxu0 %v236
        %298 = vmatpush1.msra.mxu0 %v235
        %299 = vmatprep.subr.mxu0 %v239
        %300 = vmatpush1.msra.mxu0 %v238
        %301 = vmatprep.subr.mxu0 %v242
        %302 = vmatpush1.msra.mxu0 %v241
        %303 = vmatprep.subr.mxu0 %v245
        %304 = vmatpush1.msra.mxu0 %v244
        %305 = vmatprep.subr.mxu0 %v248
        %306 = vmatpush1.msra.mxu0 %v247
        %307 = vmatprep.subr.mxu0 %v251
        %308 = vmatpush1.msra.mxu0 %v250
        %309 = vmatprep.subr.mxu0 %v254
        %310 = vmatpush1.msra.mxu0 %v253
        %311 = vmatprep.subr.mxu0 %v257
        %312 = vmatpush1.msra.mxu0 %v256
        %313 = vmatprep.subr.mxu0 %v260
        %314 = vmatpush1.msra.mxu0 %v259
        %315 = vmatprep.subr.mxu0 %v263
        %316 = vmatpush1.msra.mxu0 %v262
        %317 = vmatprep.subr.mxu0 %v266
        %318 = vmatpush1.msra.mxu0 %v265
        %319 = vmatprep.subr.mxu0 %v269
        %320 = vmatpush1.msra.mxu0 %v268
        %321 = vmatprep.subr.mxu0 %v272
        %322 = vmatpush1.msra.mxu0 %v271
        %323 = vmatprep.subr.mxu0 0.0
        %324 = vmatpush1.msra.mxu0 0.0
        %325 = vmatprep.subr.mxu0 0.0
        %326 = vmatpush1.msra.mxu0 0.0
        %327 = vmatprep.subr.mxu0 0.0
        %328 = vmatpush1.msra.mxu0 0.0
        %329 = vmatprep.subr.mxu0 0.0
        %330 = vmatpush1.msra.mxu0 0.0
        %331 = vmatprep.subr.mxu0 0.0
        %332 = vmatpush1.msra.mxu0 0.0
        %333 = vmatprep.subr.mxu0 0.0
        %334 = vmatpush1.msra.mxu0 0.0
        %335 = vmatprep.subr.mxu0 0.0
        %336 = vmatpush1.msra.mxu0 0.0
        %337 = vmatprep.subr.mxu0 0.0
        %338 = vmatpush1.msra.mxu0 0.0
        %339 = vmatprep.subr.mxu0 0.0
        %340 = vmatpush1.msra.mxu0 0.0
        %341 = vmatprep.subr.mxu0 0.0
        %342 = vmatpush1.msra.mxu0 0.0
        %343 = vmatprep.subr.mxu0 0.0
        %344 = vmatpush1.msra.mxu0 0.0
        %345 = vmatprep.subr.mxu0 0.0
        %346 = vmatpush1.msra.mxu0 0.0
        %347 = vmatprep.subr.mxu0 0.0
        %348 = vmatpush1.msra.mxu0 0.0
        %349 = vmatprep.subr.mxu0 0.0
        %350 = vmatpush1.msra.mxu0 0.0
        %351 = vmatprep.subr.mxu0 0.0
        %352 = vmatpush1.msra.mxu0 0.0
        %353 = vmatprep.subr.mxu0 0.0
        %354 = vmatpush1.msra.mxu0 0.0
        %355 = vmatprep.mubr.f32.mxu0 0.0
        %356 = vmatmul.mubr.f32.gmra.mrb[0].mxu0 %v224
        %v357 = vpop.f32.mrb[0].mxu0
        %v358 = vadd.f32 %v279, %v357
        %v359 = vpop.f32.mrb[0].mxu0
        %v360 = vadd.f32 %v283, %v359
        %361 = vmatprep.mubr.f32.mxu0 0.0
        %362 = vmatmul.mubr.f32.gmra.mrb[0].mxu0 %v225
        %v363 = vpop.f32.mrb[0].mxu0
        %v364 = vadd.f32 %v279, %v363
        %v365 = vpop.f32.mrb[0].mxu0
        %v366 = vadd.f32 %v283, %v365
        %367 = vdwg.mxu0
        %368 = vmatprep.subr.mxu0 0.0
        %369 = vmatpush1.msra.mxu0 %v228
        %370 = vmatprep.subr.mxu0 0.0
        %371 = vmatpush1.msra.mxu0 %v231
        %372 = vmatprep.subr.mxu0 0.0
        %373 = vmatpush1.msra.mxu0 %v234
        %374 = vmatprep.subr.mxu0 0.0
        %375 = vmatpush1.msra.mxu0 %v237
        %376 = vmatprep.subr.mxu0 0.0
        %377 = vmatpush1.msra.mxu0 %v240
        %378 = vmatprep.subr.mxu0 0.0
        %379 = vmatpush1.msra.mxu0 %v243
        %380 = vmatprep.subr.mxu0 0.0
        %381 = vmatpush1.msra.mxu0 %v246
        %382 = vmatprep.subr.mxu0 0.0
        %383 = vmatpush1.msra.mxu0 %v249
        %384 = vmatprep.subr.mxu0 0.0
        %385 = vmatpush1.msra.mxu0 %v252
        %386 = vmatprep.subr.mxu0 0.0
        %387 = vmatpush1.msra.mxu0 %v255
        %388 = vmatprep.subr.mxu0 0.0
        %389 = vmatpush1.msra.mxu0 %v258
        %390 = vmatprep.subr.mxu0 0.0
        %391 = vmatpush1.msra.mxu0 %v261
        %392 = vmatprep.subr.mxu0 0.0
        %393 = vmatpush1.msra.mxu0 %v264
        %394 = vmatprep.subr.mxu0 0.0
        %395 = vmatpush1.msra.mxu0 %v267
        %396 = vmatprep.subr.mxu0 0.0
        %397 = vmatpush1.msra.mxu0 %v270
        %398 = vmatprep.subr.mxu0 0.0
        %399 = vmatpush1.msra.mxu0 %v273
        %400 = vmatprep.subr.mxu0 0.0
        %401 = vmatpush1.msra.mxu0 0.0
        %402 = vmatprep.subr.mxu0 0.0
        %403 = vmatpush1.msra.mxu0 0.0
        %404 = vmatprep.subr.mxu0 0.0
        %405 = vmatpush1.msra.mxu0 0.0
        %406 = vmatprep.subr.mxu0 0.0
        %407 = vmatpush1.msra.mxu0 0.0
        %408 = vmatprep.subr.mxu0 0.0
        %409 = vmatpush1.msra.mxu0 0.0
        %410 = vmatprep.subr.mxu0 0.0
        %411 = vmatpush1.msra.mxu0 0.0
        %412 = vmatprep.subr.mxu0 0.0
        %413 = vmatpush1.msra.mxu0 0.0
        %414 = vmatprep.subr.mxu0 0.0
        %415 = vmatpush1.msra.mxu0 0.0
        %416 = vmatprep.subr.mxu0 0.0
        %417 = vmatpush1.msra.mxu0 0.0
        %418 = vmatprep.subr.mxu0 0.0
        %419 = vmatpush1.msra.mxu0 0.0
        %420 = vmatprep.subr.mxu0 0.0
        %421 = vmatpush1.msra.mxu0 0.0
        %422 = vmatprep.subr.mxu0 0.0
        %423 = vmatpush1.msra.mxu0 0.0
        %424 = vmatprep.subr.mxu0 0.0
        %425 = vmatpush1.msra.mxu0 0.0
        %426 = vmatprep.subr.mxu0 0.0
        %427 = vmatpush1.msra.mxu0 0.0
        %428 = vmatprep.subr.mxu0 0.0
        %429 = vmatpush1.msra.mxu0 0.0
        %430 = vmatprep.subr.mxu0 0.0
        %431 = vmatpush1.msra.mxu0 0.0
        %432 = vmatprep.mubr.f32.mxu0 0.0
        %433 = vmatmul.mubr.f32.gmra.mrb[0].mxu0 %v224
        %v434 = vpop.f32.mrb[0].mxu0
        %v435 = vadd.f32 %v287, %v434
        %v436 = vpop.f32.mrb[0].mxu0
        %437 = vmatprep.mubr.f32.mxu0 0.0
        %438 = vmatmul.mubr.f32.gmra.mrb[0].mxu0 %v225
        %v439 = vpop.f32.mrb[0].mxu0
        %v440 = vadd.f32 %v287, %v439
        %v441 = vpop.f32.mrb[0].mxu0
        %442 = vdwg.mxu0
        %443 = vst [vmem:[%s221] sm:$0xff] %v358
        %444 = vst [vmem:[%s221 + $0x8] sm:$0xff] %v360
        %445 = vst [vmem:[%s221 + $0x10] sm:$0xff] %v435
        %446 = vst [vmem:[%s221 + $0x18] sm:$0xff] %v364
        %447 = vst [vmem:[%s221 + $0x20] sm:$0xff] %v366
        %448 = vst [vmem:[%s221 + $0x28] sm:$0xff] %v440
        %s449 = sand.u32 %s113, 1
        %s450 = scalar_lea.sflag [#allocation4], %s449
        %s451 = sand.u32 %s113, 1
        %s452 = smul.addr %s451, 48
        %s453 = scalar_lea.vmem [#allocation7], %s452
        // Predicated region
        $region41: #{tpu_custom_call.1} parent=31 // pred_check
          %p454 = pneg %p123
        $region42: #{tpu_custom_call.1} parent=31 // pred_check_branch
          %456 = sbr.rel (%p454) target = $region44
        $region43: #{tpu_custom_call.1} parent=31 // pred_region
          %s457 = smul.u32 2, %s26
          %s459 = ssub.s32 768, 768
          %460 = vsyncadd %s450, %s459
          %s461 = smul.addr %s457, 3
          %s462 = smul.addr %s25, 6
          %s463 = sadd.s32 %s461, %s462
          %s464 = smul.addr %s463, 128
          %s465 = scalar_lea.hbm %s3, %s464
          %s466 = sshll.u32 %s453, 4
          %s467 = int_to_ptr.vmem [resolvable:$true] %s466
          %472 = dma.vmem_to_hbm [thread:$0]  %s467, 768, %s465, %s450, 384, 384, 24
        $region44: #{tpu_custom_call.1} parent=31 // pred_fallthru
          _
      $region32: #{tpu_custom_call.1} parent=5 // pred_fallthru
        _
      %p473 = scmp.le.s32.totalorder 2, %s16
      // Predicated region
      $region45: #{tpu_custom_call.1} parent=5 // pred_check
        %p474 = pneg %p473
      $region46: #{tpu_custom_call.1} parent=5 // pred_check_branch
        %476 = sbr.rel (%p474) target = $region48
      $region47: #{tpu_custom_call.1} parent=5 // pred_region
        %s477 = ssub.s32 %s16, 2
        // Predicated region
        $region49: #{tpu_custom_call.1} parent=47 // pred_check
          %p478 = pneg %p129
        $region50: #{tpu_custom_call.1} parent=47 // pred_check_branch
          %480 = sbr.rel (%p478) target = $region52
        $region51: #{tpu_custom_call.1} parent=47 // pred_region
          %s481 = sand.u32 %s114, 1
          %s482 = scalar_lea.sflag [#allocation4], %s481
          %s483 = sand.u32 %s114, 1
          %s484 = smul.addr %s483, 48
          %s485 = scalar_lea.vmem [#allocation7], %s484
          %486 = dma.done %s482, 768
        $region52: #{tpu_custom_call.1} parent=47 // pred_fallthru
          _
      $region48: #{tpu_custom_call.1} parent=5 // pred_fallthru
        _
    $region6: #{tpu_custom_call.1} parent=1 // loop_footer
      %s20 = sadd.s32 1, %s16
    $region7: #{tpu_custom_call.1} parent=1 // loop_footer_branch
      %15 = sbr.rel target = $region3
    $region8: #{tpu_custom_call.1} parent=1 // loop_exit
      _
    %487 = vsyncpa [#allocation3], 1
    %s488 = scalar_lea.sflag [#allocation3], 1
    %489 = vsyncpa %s488, 1
    %490 = vsyncpa [#allocation6], 1
    %491 = vsyncpa [#allocation4], 1
    %s492 = scalar_lea.sflag [#allocation4], 1
    %493 = vsyncpa %s492, 1

</llo_original>
